<compile_context>
chip_gen: v6e
topology: v6e:2x2x1
jax: 0.10.0
libtpu: 0.0.40
codegen_flags: <defaults>
</compile_context>

<pallas_src>
import functools
import math

import jax
import jax.numpy as jnp
import numpy as np
from jax.experimental import pallas as pl
from jax.experimental.pallas import tpu as pltpu


# ----------------------------------------------------------------------------
# Pallas kernel 1: fused 3x3 stride-1 conv with in-VMEM im2col over a haloed
# row tile.  Optional elementwise pre-multiply (FAM) and fused
# bias + ReLU + residual epilogue.  f32 accumulation in a VMEM scratch.
# ----------------------------------------------------------------------------
def _conv3x3_kernel(*refs, relu, has_mul, has_res, th, w_out):
    idx = 0
    x_main, x_halo = refs[idx], refs[idx + 1]
    idx += 2
    if has_mul:
        m_main, m_halo = refs[idx], refs[idx + 1]
        idx += 2
    w_ref, b_ref = refs[idx], refs[idx + 1]
    idx += 2
    if has_res:
        r_ref = refs[idx]
        idx += 1
    else:
        r_ref = None
    o_ref = refs[idx]
    xs_ref = refs[idx + 1]
    acc_ref = refs[idx + 2]

    # Assemble the (TH+2, W+2, Cin) haloed tile in VMEM; FAM multiply fused.
    if has_mul:
        xs_ref[0:th] = x_main[...] * m_main[...]
        xs_ref[th:th + 2] = x_halo[...] * m_halo[...]
    else:
        xs_ref[0:th] = x_main[...]
        xs_ref[th:th + 2] = x_halo[...]

    # Nine shifted-window matmuls accumulated in f32 (im2col never hits HBM).
    first = True
    for dy in range(3):
        for dx in range(3):
            patch = xs_ref[dy:dy + th, dx:dx + w_out, :]
            patch = patch.reshape(th * w_out, patch.shape[-1])
            d = jnp.dot(patch, w_ref[dy * 3 + dx],
                        preferred_element_type=jnp.float32)
            if first:
                acc_ref[...] = d
                first = False
            else:
                acc_ref[...] += d

    out = acc_ref[...] + b_ref[...].astype(jnp.float32)
    if relu:
        out = jnp.maximum(out, 0.0)
    if has_res:
        out = out + r_ref[...].reshape(th * w_out, -1).astype(jnp.float32)
    o_ref[...] = out.reshape(th, w_out, -1).astype(o_ref.dtype)


def _choose_rows(n, h, w, cin, cout, has_mul):
    """Row-tile TH for the fused 3x3 conv (None -> im2col fallback path)."""
    if h < 2 or h % 2 or w % 8:
        return None
    budget = 10 * 2 ** 20
    wp = w + 2
    valid = []
    for th in range(2, h + 1, 2):
        if h % th:
            continue
        n_in = 2 if has_mul else 1
        xin = (th + 2) * wp * cin * 2 * n_in          # haloed bf16 input tile(s)
        outb = th * w * cout * 2
        resb = th * w * cout * 4                      # worst-case f32 residual
        accb = th * w * cout * 4                      # f32 accumulator scratch
        xsb = (th + 2) * wp * cin * 2                 # assembly scratch
        tot = 2 * (xin + outb + resb) + accb + xsb    # double-buffered blocks
        if tot <= budget and accb <= 2 * 2 ** 20:
            valid.append(th)
    if not valid:
        return None
    pref = [t for t in valid if n * (h // t) >= 2]    # keep both v7x TCs busy
    return max(pref) if pref else max(valid)


def _conv3x3_pallas(p, x, th, premul, residual, out_dtype):
    n, h, w, cin = x.shape
    cout = p["b"].shape[-1]
    wp = w + 2
    xp = jnp.pad(x.astype(jnp.bfloat16), ((0, 0), (1, 1), (1, 1), (0, 0)))

    main_spec = pl.BlockSpec((None, th, wp, cin), lambda b, i: (b, i, 0, 0))
    halo_spec = pl.BlockSpec((None, 2, wp, cin),
                             lambda b, i: (b, (i + 1) * (th // 2), 0, 0))
    args = [xp, xp]
    in_specs = [main_spec, halo_spec]
    if premul is not None:
        mp = jnp.pad(premul.astype(jnp.bfloat16),
                     ((0, 0), (1, 1), (1, 1), (0, 0)))
        args += [mp, mp]
        in_specs += [main_spec, halo_spec]
    args.append(p["w"])                                   # (9, Cin, Cout) bf16
    in_specs.append(pl.BlockSpec((9, cin, cout), lambda b, i: (0, 0, 0)))
    args.append(p["b"])                                   # (1, Cout) f32
    in_specs.append(pl.BlockSpec((1, cout), lambda b, i: (0, 0)))
    if residual is not None:
        args.append(residual)
        in_specs.append(pl.BlockSpec((None, th, w, cout),
                                     lambda b, i: (b, i, 0, 0)))

    return pl.pallas_call(
        functools.partial(_conv3x3_kernel, relu=p["relu"],
                          has_mul=premul is not None,
                          has_res=residual is not None, th=th, w_out=w),
        out_shape=jax.ShapeDtypeStruct((n, h, w, cout), out_dtype),
        grid=(n, h // th),
        in_specs=in_specs,
        out_specs=pl.BlockSpec((None, th, w, cout), lambda b, i: (b, i, 0, 0)),
        scratch_shapes=[pltpu.VMEM((th + 2, wp, cin), jnp.bfloat16),
                        pltpu.VMEM((th * w, cout), jnp.float32)],
        compiler_params=pltpu.CompilerParams(
            dimension_semantics=("parallel", "parallel"),
            vmem_limit_bytes=32 * 1024 * 1024),
    )(*args)


# ----------------------------------------------------------------------------
# Pallas kernel 2: flattened multi-source GEMM (no K grid axis, no scratch),
# fused bias + ReLU + residual.  Used for 1x1 convs (incl. concat-free
# multi-source), stride-2 / transpose-phase im2col GEMMs and AFF partials.
# ----------------------------------------------------------------------------
def _matmul_kernel(*refs, n_src, relu, has_res):
    x_refs = refs[:n_src]
    w_refs = refs[n_src:2 * n_src]
    b_ref = refs[2 * n_src]
    r_ref = refs[2 * n_src + 1] if has_res else None
    o_ref = refs[-1]

    acc = jnp.dot(x_refs[0][...], w_refs[0][...],
                  preferred_element_type=jnp.float32)
    for s in range(1, n_src):
        acc = acc + jnp.dot(x_refs[s][...], w_refs[s][...],
                            preferred_element_type=jnp.float32)
    out = acc + b_ref[...].astype(jnp.float32)
    if relu:
        out = jnp.maximum(out, 0.0)
    if has_res:
        out = out + r_ref[...].astype(jnp.float32)
    o_ref[...] = out.astype(o_ref.dtype)


def _choose_tm(m, k_total, nout, has_res):
    budget = 12 * 2 ** 20
    best = 8
    for tm in (8192, 4096, 2048, 1024, 512, 256, 128, 64, 32, 16, 8):
        if tm > m and tm > 8:
            continue
        blocks = 2 * tm * (k_total * 2 + nout * 2 + (nout * 4 if has_res else 0))
        if blocks <= budget:
            best = tm
            break
    while best > 256 and pl.cdiv(m, best) < 2:            # megacore occupancy
        best //= 2
    return best


def matmul_fused(sources, bias, *, relu, residual=None,
                 out_dtype=jnp.bfloat16):
    """out = act(sum_s x_s @ w_s + bias) (+ residual); bf16 MXU, f32 acc."""
    m = sources[0][0].shape[0]
    nout = sources[0][1].shape[1]
    k_total = sum(wsrc.shape[0] for _, wsrc in sources)
    tm = _choose_tm(m, k_total, nout, residual is not None)

    args, in_specs = [], []
    for xs, _ in sources:
        args.append(xs.astype(jnp.bfloat16))
        in_specs.append(pl.BlockSpec((tm, xs.shape[1]), lambda i: (i, 0)))
    for _, ws in sources:
        args.append(ws.astype(jnp.bfloat16))
        in_specs.append(pl.BlockSpec(ws.shape, lambda i: (0, 0)))
    args.append(bias)
    in_specs.append(pl.BlockSpec((1, nout), lambda i: (0, 0)))
    if residual is not None:
        args.append(residual)
        in_specs.append(pl.BlockSpec((tm, nout), lambda i: (i, 0)))

    return pl.pallas_call(
        functools.partial(_matmul_kernel, n_src=len(sources), relu=relu,
                          has_res=residual is not None),
        out_shape=jax.ShapeDtypeStruct((m, nout), out_dtype),
        grid=(pl.cdiv(m, tm),),
        in_specs=in_specs,
        out_specs=pl.BlockSpec((tm, nout), lambda i: (i, 0)),
        compiler_params=pltpu.CompilerParams(
            dimension_semantics=("parallel",),
            vmem_limit_bytes=32 * 1024 * 1024),
    )(*args)


# ----------------------------------------------------------------------------
# Convolution wrappers.
# ----------------------------------------------------------------------------
def _im2col(x, kh, kw, stride, pad):
    n, h, w, c = x.shape
    (pt, pb), (pleft, pright) = pad
    xp = jnp.pad(x, ((0, 0), (pt, pb), (pleft, pright), (0, 0)))
    ho = (h + pt + pb - kh) // stride + 1
    wo = (w + pleft + pright - kw) // stride + 1
    taps = []
    for dy in range(kh):
        for dx in range(kw):
            taps.append(xp[:, dy:dy + (ho - 1) * stride + 1:stride,
                           dx:dx + (wo - 1) * stride + 1:stride, :])
    col = jnp.stack(taps, axis=3).reshape(n * ho * wo, kh * kw * c)
    return col, ho, wo


def _conv_im2col(p, x, premul, residual, out_dtype):
    # Fallback path (stride-2 convs, odd / narrow maps).
    if premul is not None:
        x = x.astype(jnp.bfloat16) * premul.astype(jnp.bfloat16)
    n, h, w, cin = x.shape
    k, stride = p["k"], p["stride"]
    pad = k // 2
    col, ho, wo = _im2col(x.astype(jnp.bfloat16), k, k, stride,
                          ((pad, pad), (pad, pad)))
    r2 = None if residual is None else residual.reshape(-1, residual.shape[-1])
    out = matmul_fused([(col, p["w"].reshape(k * k * cin, -1))], p["b"],
                       relu=p["relu"], residual=r2, out_dtype=out_dtype)
    return out.reshape(n, ho, wo, -1)


def conv_transpose2d(p, x, out_dtype=jnp.bfloat16):
    # ConvTranspose2d(k=4, s=2, p=1) as 4 sub-pixel-phase 2x2 stride-1 convs.
    # TODO(synk): real PyTorch ConvTranspose2d weights need a spatial flip and
    # in/out-channel transpose before this phase split (synthetic weights here).
    # TODO(synk): the phase interleave stays in XLA; strided Pallas output
    # blocks would violate the (8,128) rule at Cout=32/64.
    n, h, w, _ = x.shape
    cout = p["b"].shape[-1]
    xb = x.astype(jnp.bfloat16)
    rows = []
    for py in range(2):
        cols_ = []
        for px in range(2):
            col, ho, wo = _im2col(xb, 2, 2, 1, ((1 - py, py), (1 - px, px)))
            o = matmul_fused([(col, p["w_phase"][py][px])], p["b"],
                             relu=p["relu"], out_dtype=out_dtype)
            cols_.append(o.reshape(n, ho, wo, cout))
        rows.append(jnp.stack(cols_, axis=3))          # (N, H, W, 2, C)
    full = jnp.stack(rows, axis=2)                     # (N, H, 2, W, 2, C)
    return full.reshape(n, 2 * h, 2 * w, cout)         # contiguous reshape


def basic_conv(p, x, premul=None, residual=None, out_dtype=jnp.bfloat16):
    if p.get("transpose"):
        assert premul is None and residual is None
        return conv_transpose2d(p, x, out_dtype)
    n, h, w, cin = x.shape
    k, stride = p["k"], p["stride"]
    if k == 1 and stride == 1 and premul is None:
        r2 = None if residual is None else residual.reshape(
            -1, residual.shape[-1])
        out = matmul_fused([(x.reshape(-1, cin), p["w"].reshape(cin, -1))],
                           p["b"], relu=p["relu"], residual=r2,
                           out_dtype=out_dtype)
        return out.reshape(n, h, w, -1)
    if k == 3 and stride == 1:
        cout = p["b"].shape[-1]
        th = _choose_rows(n, h, w, cin, cout, premul is not None)
        if th is not None:
            return _conv3x3_pallas(p, x, th, premul, residual, out_dtype)
    return _conv_im2col(p, x, premul, residual, out_dtype)


def conv1x1_concat(p, srcs, out_dtype=jnp.bfloat16):
    """1x1 conv over a channel-concat without materializing the concat."""
    n, h, w = srcs[0].shape[:3]
    w2 = p["w"].reshape(p["w"].shape[1], -1)
    pairs, off = [], 0
    for t in srcs:
        c = t.shape[-1]
        pairs.append((t.reshape(n * h * w, c), w2[off:off + c]))
        off += c
    out = matmul_fused(pairs, p["b"], relu=p["relu"], out_dtype=out_dtype)
    return out.reshape(n, h, w, -1)


# F.interpolate(mode='nearest') equivalents (NHWC).
def down2(x):
    return x[:, ::2, ::2, :]


def up2(x):
    return jnp.repeat(jnp.repeat(x, 2, axis=1), 2, axis=2)


# ----------------------------------------------------------------------------
# Deterministic parameter construction (mirrors MIMOUNetPlus.__init__ shapes).
# Weights are stored in kernel layouts and cast to bf16 once here.
# ----------------------------------------------------------------------------
class KeyGen:
    def __init__(self, seed):
        self._key = jax.random.PRNGKey(seed)

    def __call__(self):
        self._key, sub = jax.random.split(self._key)
        return sub


def init_conv(kg, cin, cout, k, relu, stride=1, cout_pad=None):
    fan_in = k * k * cin
    w = jax.random.normal(kg(), (k, k, cin, cout), jnp.float32) / math.sqrt(fan_in)
    b = jax.random.normal(kg(), (cout,), jnp.float32) * 0.01
    if cout_pad is not None and cout_pad > cout:      # zero-pad output channels
        w = jnp.concatenate(
            [w, jnp.zeros((k, k, cin, cout_pad - cout), jnp.float32)], axis=-1)
        b = jnp.concatenate([b, jnp.zeros((cout_pad - cout,), jnp.float32)])
    return {"k": k, "stride": stride, "relu": relu,
            "w": w.reshape(k * k, cin, -1).astype(jnp.bfloat16),
            "b": b.reshape(1, -1)}


def init_transpose(kg, cin, cout, relu=True):
    k = 4
    w = jax.random.normal(kg(), (k, k, cin, cout), jnp.float32) / math.sqrt(k * k * cin)
    b = jax.random.normal(kg(), (cout,), jnp.float32) * 0.01
    return {"transpose": True, "relu": relu, "b": b.reshape(1, -1),
            "w_phase": [[w[py::2, px::2].reshape(4 * cin, cout).astype(jnp.bfloat16)
                         for px in range(2)] for py in range(2)]}


def init_resblock(kg, ch):
    return [init_conv(kg, ch, ch, 3, relu=True),
            init_conv(kg, ch, ch, 3, relu=False)]


def init_block(kg, ch, num_res):
    return [init_resblock(kg, ch) for _ in range(num_res)]


def init_aff(kg, cin, cout):
    w0 = jax.random.normal(kg(), (cin, cout), jnp.float32) / math.sqrt(cin)
    b0 = jax.random.normal(kg(), (cout,), jnp.float32) * 0.01
    return {"w0": w0.astype(jnp.bfloat16), "b0": b0.reshape(1, -1),
            "conv1": init_conv(kg, cout, cout, 3, relu=False)}


def init_fam(kg, ch):
    return {"merge": init_conv(kg, ch, ch, 3, relu=False)}


def init_scm(kg, out_plane, input_plane=3):
    mid = out_plane - input_plane
    mid_pad = ((mid + 7) // 8) * 8            # 61 -> 64, 125 -> 128
    p = {"main": [
        init_conv(kg, input_plane, out_plane // 4, 3, relu=True),
        init_conv(kg, out_plane // 4, out_plane // 2, 1, relu=True),
        init_conv(kg, out_plane // 2, out_plane // 2, 3, relu=True),
        init_conv(kg, out_plane // 2, mid, 1, relu=True, cout_pad=mid_pad),
    ]}
    w = jax.random.normal(kg(), (out_plane, out_plane), jnp.float32) / math.sqrt(out_plane)
    w = jnp.concatenate([w, jnp.zeros((mid_pad - mid, out_plane), jnp.float32)],
                        axis=0)               # zero rows for the padded channels
    b = jax.random.normal(kg(), (out_plane,), jnp.float32) * 0.01
    p["conv"] = {"k": 1, "stride": 1, "relu": False,
                 "w": w.reshape(1, input_plane + mid_pad, out_plane).astype(jnp.bfloat16),
                 "b": b.reshape(1, -1)}
    return p


def init_mimounet_plus(kg, num_res=20):
    bc = 32
    return {
        "Encoder": [init_block(kg, bc, num_res),
                    init_block(kg, bc * 2, num_res),
                    init_block(kg, bc * 4, num_res)],
        "feat_extract": [
            init_conv(kg, 3, bc, 3, relu=True),
            init_conv(kg, bc, bc * 2, 3, relu=True, stride=2),
            init_conv(kg, bc * 2, bc * 4, 3, relu=True, stride=2),
            init_transpose(kg, bc * 4, bc * 2, relu=True),
            init_transpose(kg, bc * 2, bc, relu=True),
            init_conv(kg, bc, 3, 3, relu=False),
        ],
        "Decoder": [init_block(kg, bc * 4, num_res),
                    init_block(kg, bc * 2, num_res),
                    init_block(kg, bc, num_res)],
        "Convs": [init_conv(kg, bc * 4, bc * 2, 1, relu=True),
                  init_conv(kg, bc * 2, bc, 1, relu=True)],
        "ConvsOut": [init_conv(kg, bc * 4, 3, 3, relu=False),
                     init_conv(kg, bc * 2, 3, 3, relu=False)],
        "AFFs": [init_aff(kg, bc * 7, bc), init_aff(kg, bc * 7, bc * 2)],
        "FAM1": init_fam(kg, bc * 4), "SCM1": init_scm(kg, bc * 4),
        "FAM2": init_fam(kg, bc * 2), "SCM2": init_scm(kg, bc * 2),
    }


# ----------------------------------------------------------------------------
# Sub-module forwards.
# ----------------------------------------------------------------------------
def resblock(p, x):
    y = basic_conv(p[0], x)
    return basic_conv(p[1], y, residual=x)      # residual add fused in kernel


def block(p, x):                                # EBlock / DBlock
    for rb in p:
        x = resblock(rb, x)
    return x


def fam(p, x1, x2):
    # out = x1 + conv(x1 * x2): multiply, conv and residual in one kernel.
    return basic_conv(p["merge"], x1, premul=x2, residual=x1)


def scm(p, x):
    y = x
    for cp in p["main"]:
        y = basic_conv(cp, y)
    return conv1x1_concat(p["conv"], [x, y])    # concat-free final 1x1


def aff(p, srcs):
    """AFF with the 1x1 conv commuted through nearest-neighbour upsampling.

    srcs: [(tensor, up_factor), ...] in the original concat order.  Because
    up(x) @ W == up(x @ W) for nearest-neighbour upsampling, each source is
    1x1-convolved at its own (low) resolution and only the narrow partial
    products are upsampled and summed -- z21/z41/z42 are never materialized.
    """
    cout = p["b0"].shape[-1]
    acc, off = None, 0
    for idx, (t, f) in enumerate(srcs):
        n, h, w, c = t.shape
        bias = p["b0"] if idx == 0 else jnp.zeros((1, cout), jnp.float32)
        o = matmul_fused([(t.reshape(n * h * w, c), p["w0"][off:off + c])],
                         bias, relu=False)
        o = o.reshape(n, h, w, cout)
        for _ in range({1: 0, 2: 1, 4: 2}[f]):
            o = up2(o)
        acc = o if acc is None else acc + o
        off += c
    a = jnp.maximum(acc, 0).astype(jnp.bfloat16)        # ReLU of the 1x1 conv
    return basic_conv(p["conv1"], a)                    # 3x3, relu=False


# ----------------------------------------------------------------------------
# Full forward (NCHW in / NCHW out, like the PyTorch module).
# ----------------------------------------------------------------------------
def mimounet_plus_forward(p, x_nchw):
    x = jnp.transpose(x_nchw, (0, 2, 3, 1))             # NHWC, f32 residuals
    x_2 = down2(x)
    x_4 = down2(x_2)
    z2 = scm(p["SCM2"], x_2)
    z4 = scm(p["SCM1"], x_4)
    outputs = []

    x_ = basic_conv(p["feat_extract"][0], x)
    res1 = block(p["Encoder"][0], x_)

    z = basic_conv(p["feat_extract"][1], res1)
    z = fam(p["FAM2"], z, z2)
    res2 = block(p["Encoder"][1], z)

    z = basic_conv(p["feat_extract"][2], res2)
    z = fam(p["FAM1"], z, z4)
    z = block(p["Encoder"][2], z)

    z12 = down2(res1)
    res2_new = aff(p["AFFs"][1], [(z12, 1), (res2, 1), (z, 2)])
    res1_new = aff(p["AFFs"][0], [(res1, 1), (res2, 2), (z, 4)])
    res1, res2 = res1_new, res2_new
    # TODO(synk): nn.Dropout2d(0.1) is stochastic in train mode; eval-mode
    # (identity) semantics are used here.

    z = block(p["Decoder"][0], z)
    out1 = basic_conv(p["ConvsOut"][0], z, residual=x_4, out_dtype=jnp.float32)
    z = conv_transpose2d(p["feat_extract"][3], z)
    outputs.append(jnp.transpose(out1, (0, 3, 1, 2)))

    z = conv1x1_concat(p["Convs"][0], [z, res2])         # concat-free skip
    z = block(p["Decoder"][1], z)
    out2 = basic_conv(p["ConvsOut"][1], z, residual=x_2, out_dtype=jnp.float32)
    z = conv_transpose2d(p["feat_extract"][4], z)
    outputs.append(jnp.transpose(out2, (0, 3, 1, 2)))

    z = conv1x1_concat(p["Convs"][1], [z, res1])
    z = block(p["Decoder"][2], z)
    out3 = basic_conv(p["feat_extract"][5], z, residual=x, out_dtype=jnp.float32)
    outputs.append(jnp.transpose(out3, (0, 3, 1, 2)))
    return outputs


if __name__ == "__main__":
    ks = jax.random.split(jax.random.PRNGKey(0), 12)

    # ---- unit check 1: multi-source fused matmul (bias + ReLU + residual) ----
    a1 = jax.random.normal(ks[0], (160, 96), jnp.float32)
    w1 = jax.random.normal(ks[1], (96, 64), jnp.float32) * 0.05
    a2 = jax.random.normal(ks[2], (160, 32), jnp.float32)
    w2 = jax.random.normal(ks[3], (32, 64), jnp.float32) * 0.05
    bb = jax.random.normal(ks[4], (1, 64), jnp.float32) * 0.01
    rr = jax.random.normal(ks[5], (160, 64), jnp.float32)
    got = matmul_fused([(a1, w1), (a2, w2)], bb, relu=True, residual=rr,
                       out_dtype=jnp.float32)
    got = np.asarray(jax.block_until_ready(got))

    def _bf(t):
        return np.asarray(t.astype(jnp.bfloat16).astype(jnp.float32))

    ref = np.maximum(_bf(a1) @ _bf(w1) + _bf(a2) @ _bf(w2) + np.asarray(bb), 0.0)
    ref = ref + np.asarray(rr)
    assert np.allclose(got, ref, atol=2e-2, rtol=2e-2), np.abs(got - ref).max()

    # ---- unit check 2: fused halo 3x3 conv (premul + residual) vs lax.conv ----
    xc = jax.random.normal(ks[6], (1, 16, 16, 16), jnp.float32)
    mc = jax.random.normal(ks[7], (1, 16, 16, 16), jnp.float32)
    rc = jax.random.normal(ks[8], (1, 16, 16, 32), jnp.float32)
    wc = jax.random.normal(ks[9], (3, 3, 16, 32), jnp.float32) * 0.1
    bcv = jax.random.normal(ks[10], (1, 32), jnp.float32) * 0.01
    pconv = {"k": 3, "stride": 1, "relu": False,
             "w": wc.reshape(9, 16, 32).astype(jnp.bfloat16), "b": bcv}
    got = basic_conv(pconv, xc, premul=mc, residual=rc, out_dtype=jnp.float32)
    got = np.asarray(jax.block_until_ready(got))
    prod = (xc.astype(jnp.bfloat16) * mc.astype(jnp.bfloat16)).astype(jnp.float32)
    ref = jax.lax.conv_general_dilated(
        prod, wc.astype(jnp.bfloat16).astype(jnp.float32), (1, 1), "SAME",
        dimension_numbers=("NHWC", "HWIO", "NHWC"))
    ref = np.asarray(ref + bcv.reshape(1, 1, 1, -1) + rc)
    assert np.allclose(got, ref, atol=2e-2, rtol=2e-2), np.abs(got - ref).max()

    # ---- full model at small, shape-consistent sizes ----
    # (num_res reduced from the default 20 to keep the example fast; per-layer
    # semantics are identical.)
    kg = KeyGen(0)
    params = init_mimounet_plus(kg, num_res=2)
    x = jax.random.normal(jax.random.PRNGKey(0), (2, 3, 32, 32), jnp.float32)

    fwd = jax.jit(functools.partial(mimounet_plus_forward, params))
    outs = fwd(x)
    outs = [jax.block_until_ready(o) for o in outs]

    expected = [(2, 3, 8, 8), (2, 3, 16, 16), (2, 3, 32, 32)]
    assert [tuple(o.shape) for o in outs] == expected, [o.shape for o in outs]
    assert all(bool(jnp.all(jnp.isfinite(o))) for o in outs)
    print("KERNEL_OK")
</pallas_src>

<mosaic_0001>
module attributes {stable_mosaic.version = 11 : i64} {
  func.func @_matmul_kernel(%arg0: i32, %arg1: memref<128x96xbf16, #tpu.memory_space<vmem>>, %arg2: memref<128x32xbf16, #tpu.memory_space<vmem>>, %arg3: memref<96x64xbf16, #tpu.memory_space<vmem>>, %arg4: memref<32x64xbf16, #tpu.memory_space<vmem>>, %arg5: memref<1x64xf32, #tpu.memory_space<vmem>>, %arg6: memref<128x64xf32, #tpu.memory_space<vmem>>, %arg7: memref<128x64xf32, #tpu.memory_space<vmem>>) attributes {dimension_semantics = [#tpu.dimension_semantics<parallel>], iteration_bounds = array<i64: 2>, scalar_prefetch = 0 : i64, scratch_operands = 0 : i64, tpu.core_type = #tpu.core_type<tc>, window_params = [{transform_indices = @transform_0, window_bounds = array<i64: 128, 96>}, {transform_indices = @transform_1, window_bounds = array<i64: 128, 32>}, {pipeline_mode = #tpu.pipeline_mode<synchronous>, transform_indices = @transform_2, window_bounds = array<i64: 96, 64>}, {pipeline_mode = #tpu.pipeline_mode<synchronous>, transform_indices = @transform_3, window_bounds = array<i64: 32, 64>}, {pipeline_mode = #tpu.pipeline_mode<synchronous>, transform_indices = @transform_4, window_bounds = array<i64: 1, 64>}, {transform_indices = @transform_5, window_bounds = array<i64: 128, 64>}, {transform_indices = @transform_6, window_bounds = array<i64: 128, 64>}]} {
    %c0 = arith.constant 0 : index
    %c0_0 = arith.constant 0 : index
    %0 = vector.load %arg1[%c0, %c0_0] : memref<128x96xbf16, #tpu.memory_space<vmem>>, vector<128x96xbf16>
    %c0_1 = arith.constant 0 : index
    %c0_2 = arith.constant 0 : index
    %1 = vector.load %arg3[%c0_1, %c0_2] : memref<96x64xbf16, #tpu.memory_space<vmem>>, vector<96x64xbf16>
    %cst = arith.constant dense<0.000000e+00> : vector<128x64xf32>
    %2 = tpu.matmul %0, %1, %cst {dimension_numbers = #tpu.dot_dimension_numbers<[1], [0], [0], [1], [0, 0, 1, 1], [], []>} : vector<128x96xbf16>, vector<96x64xbf16>, vector<128x64xf32> -> vector<128x64xf32>
    %c0_3 = arith.constant 0 : index
    %c0_4 = arith.constant 0 : index
    %3 = vector.load %arg2[%c0_3, %c0_4] : memref<128x32xbf16, #tpu.memory_space<vmem>>, vector<128x32xbf16>
    %c0_5 = arith.constant 0 : index
    %c0_6 = arith.constant 0 : index
    %4 = vector.load %arg4[%c0_5, %c0_6] : memref<32x64xbf16, #tpu.memory_space<vmem>>, vector<32x64xbf16>
    %cst_7 = arith.constant dense<0.000000e+00> : vector<128x64xf32>
    %5 = tpu.matmul %3, %4, %cst_7 {dimension_numbers = #tpu.dot_dimension_numbers<[1], [0], [0], [1], [0, 0, 1, 1], [], []>} : vector<128x32xbf16>, vector<32x64xbf16>, vector<128x64xf32> -> vector<128x64xf32>
    %6 = arith.addf %2, %5 : vector<128x64xf32>
    %c0_8 = arith.constant 0 : index
    %c0_9 = arith.constant 0 : index
    %7 = vector.load %arg5[%c0_8, %c0_9] : memref<1x64xf32, #tpu.memory_space<vmem>>, vector<1x64xf32>
    %8 = vector.broadcast %7 : vector<1x64xf32> to vector<128x64xf32>
    %9 = arith.addf %6, %8 : vector<128x64xf32>
    %cst_10 = arith.constant 0.000000e+00 : f32
    %10 = vector.broadcast %cst_10 : f32 to vector<128x64xf32>
    %11 = arith.maximumf %9, %10 : vector<128x64xf32>
    %c0_11 = arith.constant 0 : index
    %c0_12 = arith.constant 0 : index
    %12 = vector.load %arg6[%c0_11, %c0_12] : memref<128x64xf32, #tpu.memory_space<vmem>>, vector<128x64xf32>
    %13 = arith.addf %11, %12 : vector<128x64xf32>
    %c0_13 = arith.constant 0 : index
    %c0_14 = arith.constant 0 : index
    %14 = vector.load %arg7[%c0_13, %c0_14] : memref<128x64xf32, #tpu.memory_space<vmem>>, vector<128x64xf32>
    tpu.vector_store %arg7[%c0_13, %c0_14], %13 {strides = array<i32>} : memref<128x64xf32, #tpu.memory_space<vmem>>, vector<128x64xf32>,
    return
  }
  func.func @transform_0(%arg0: i32) -> (i32, i32) {
    %c0_i32 = arith.constant 0 : i32
    %c0_i32_0 = arith.constant 0 : i32
    return %arg0, %c0_i32 : i32, i32
  }
  func.func @transform_1(%arg0: i32) -> (i32, i32) {
    %c0_i32 = arith.constant 0 : i32
    %c0_i32_0 = arith.constant 0 : i32
    return %arg0, %c0_i32 : i32, i32
  }
  func.func @transform_2(%arg0: i32) -> (i32, i32) {
    %c0_i32 = arith.constant 0 : i32
    %c0_i32_0 = arith.constant 0 : i32
    %c0_i32_1 = arith.constant 0 : i32
    return %c0_i32, %c0_i32_0 : i32, i32
  }
  func.func @transform_3(%arg0: i32) -> (i32, i32) {
    %c0_i32 = arith.constant 0 : i32
    %c0_i32_0 = arith.constant 0 : i32
    %c0_i32_1 = arith.constant 0 : i32
    return %c0_i32, %c0_i32_0 : i32, i32
  }
  func.func @transform_4(%arg0: i32) -> (i32, i32) {
    %c0_i32 = arith.constant 0 : i32
    %c0_i32_0 = arith.constant 0 : i32
    %c0_i32_1 = arith.constant 0 : i32
    return %c0_i32, %c0_i32_0 : i32, i32
  }
  func.func @transform_5(%arg0: i32) -> (i32, i32) {
    %c0_i32 = arith.constant 0 : i32
    %c0_i32_0 = arith.constant 0 : i32
    return %arg0, %c0_i32 : i32, i32
  }
  func.func @transform_6(%arg0: i32) -> (i32, i32) {
    %c0_i32 = arith.constant 0 : i32
    %c0_i32_0 = arith.constant 0 : i32
    return %arg0, %c0_i32 : i32, i32
  }
}

</mosaic_0001>

<llo_original>
// kernel: tpu_custom_call.1
$region0: #{tpu_custom_call.1}
  #allocation0 [shape = 'u32[]', space=smem, size = 0x4, offset = 0x4, fixed_abs, tag = 'smem constant byte address 0x4 - core index']
  #allocation1 [shape = 'u32[144,128]{1,0:T(1,128)}', space=vmem, size = 0x12000, scoped, tag = 'internal scratch']
  %s0 = inlined_call_operand.vmem [shape: bf16[160,96], index: 0, kind: input, shape index: {}]
  %s1 = inlined_call_operand.vmem [shape: bf16[160,32], index: 1, kind: input, shape index: {}]
  %s2 = inlined_call_operand.vmem [shape: bf16[96,64], index: 2, kind: input, shape index: {}]
  %s3 = inlined_call_operand.vmem [shape: bf16[32,64], index: 3, kind: input, shape index: {}]
  %s4 = inlined_call_operand.vmem [shape: f32[1,64], index: 4, kind: input, shape index: {}]
  %s5 = inlined_call_operand.vmem [shape: f32[160,64], index: 5, kind: input, shape index: {}]
  %s6 = inlined_call_operand.vmem [shape: f32[160,64], index: 6, kind: output, shape index: {}]
  %s7 = sld [smem:[#allocation0]]
  $region105: #{tpu_custom_call.1} parent=0
    _
  %s9 = ssub.s32 1, %s7
  %s10 = scalar_select 0, %s9, %s7
  $region1: #{tpu_custom_call.1} parent=0
    #allocation2 [shape = 'u8[131072]{0}', space=vmem, size = 0x20000, scoped, tag = 'output window, operand 0']
    loop: start=0, step=1, limit=4
    $region2: #{tpu_custom_call.1} parent=1 // loop_pre_header
      _
    $region3: #{tpu_custom_call.1} parent=1 // loop_header
      %s12 = sphi 0, %s16
      %p13 = scmp.ge.s32.totalorder %s12, 4
      %s22 = sphi 0, %s24
      %s25 = sphi 0, %s22
      %s26 = sphi 0, %s25
      %s42 = sphi 0, %s26
      %s48 = sphi 0, %s50
      %s51 = sphi 0, %s48
      %s52 = sphi 0, %s51
      %s68 = sphi 0, %s52
      %s72 = sphi 0, %s72
      %s74 = sphi 0, %s72
      %s75 = sphi 0, %s74
      %s89 = sphi 0, %s75
      %s93 = sphi 0, %s93
      %s95 = sphi 0, %s93
      %s96 = sphi 0, %s95
      %s110 = sphi 0, %s96
      %s114 = sphi 0, %s114
      %s116 = sphi 0, %s114
      %s117 = sphi 0, %s116
      %s131 = sphi 0, %s117
      %s137 = sphi 0, %s139
      %s140 = sphi 0, %s137
      %s141 = sphi 0, %s140
      %s157 = sphi 0, %s141
      %s163 = sphi 0, %s165
      %s166 = sphi 0, %s163
      %s167 = sphi 0, %s166
      %s183 = sphi 0, %s167
    $region4: #{tpu_custom_call.1} parent=1 // loop_header_branch
      %15 = sbr.rel (%p13) target = $region8
    $region5: #{tpu_custom_call.1} parent=1 // loop_body
      %s17 = ssub.s32 %s12, 1
      %s18 = ssub.s32 %s12, 2
      %s19 = sadd.s32 %s12, 1
      %s20 = ssub.s32 %s12, %s19
      %p21 = scmp.eq.s32.totalorder %s20, 0
      %s23 = sadd.s32 %s22, 1
      %s24 = scalar_select %p21, %s22, %s23
      %p27 = pneg %p21
      %p28 = scmp.eq.s32.totalorder %s12, 1
      %p29 = por %p27, %p28
      %p30 = scmp.ne.s32.totalorder %s22, %s25
      %p31 = scmp.eq.s32.totalorder %s12, 0
      %p32 = por %p30, %p31
      %p33 = scmp.ne.s32.totalorder %s22, %s25
      %p34 = scmp.eq.s32.totalorder %s17, 1
      %p35 = por %p33, %p34
      %p36 = scmp.ne.s32.totalorder %s25, %s26
      %p37 = scmp.eq.s32.totalorder %s17, 0
      %p38 = por %p36, %p37
      %p39 = scmp.ne.s32.totalorder %s25, %s26
      %p40 = scmp.eq.s32.totalorder %s18, 1
      %p41 = por %p39, %p40
      %p43 = scmp.ne.s32.totalorder %s26, %s42
      %p44 = scmp.eq.s32.totalorder %s18, 0
      %p45 = por %p43, %p44
      %s46 = ssub.s32 %s12, %s19
      %p47 = scmp.eq.s32.totalorder %s46, 0
      %s49 = sadd.s32 %s48, 1
      %s50 = scalar_select %p47, %s48, %s49
      %p53 = pneg %p47
      %p54 = scmp.eq.s32.totalorder %s12, 1
      %p55 = por %p53, %p54
      %p56 = scmp.ne.s32.totalorder %s48, %s51
      %p57 = scmp.eq.s32.totalorder %s12, 0
      %p58 = por %p56, %p57
      %p59 = scmp.ne.s32.totalorder %s48, %s51
      %p60 = scmp.eq.s32.totalorder %s17, 1
      %p61 = por %p59, %p60
      %p62 = scmp.ne.s32.totalorder %s51, %s52
      %p63 = scmp.eq.s32.totalorder %s17, 0
      %p64 = por %p62, %p63
      %p65 = scmp.ne.s32.totalorder %s51, %s52
      %p66 = scmp.eq.s32.totalorder %s18, 1
      %p67 = por %p65, %p66
      %p69 = scmp.ne.s32.totalorder %s52, %s68
      %p70 = scmp.eq.s32.totalorder %s18, 0
      %p71 = por %p69, %p70
      %s73 = sadd.s32 %s72, 1
      %p76 = scmp.eq.s32.totalorder %s12, 1
      %p77 = scmp.ne.s32.totalorder %s72, %s74
      %p78 = scmp.eq.s32.totalorder %s12, 0
      %p79 = por %p77, %p78
      %p80 = scmp.ne.s32.totalorder %s72, %s74
      %p81 = scmp.eq.s32.totalorder %s17, 1
      %p82 = por %p80, %p81
      %p83 = scmp.ne.s32.totalorder %s74, %s75
      %p84 = scmp.eq.s32.totalorder %s17, 0
      %p85 = por %p83, %p84
      %p86 = scmp.ne.s32.totalorder %s74, %s75
      %p87 = scmp.eq.s32.totalorder %s18, 1
      %p88 = por %p86, %p87
      %p90 = scmp.ne.s32.totalorder %s75, %s89
      %p91 = scmp.eq.s32.totalorder %s18, 0
      %p92 = por %p90, %p91
      %s94 = sadd.s32 %s93, 1
      %p97 = scmp.eq.s32.totalorder %s12, 1
      %p98 = scmp.ne.s32.totalorder %s93, %s95
      %p99 = scmp.eq.s32.totalorder %s12, 0
      %p100 = por %p98, %p99
      %p101 = scmp.ne.s32.totalorder %s93, %s95
      %p102 = scmp.eq.s32.totalorder %s17, 1
      %p103 = por %p101, %p102
      %p104 = scmp.ne.s32.totalorder %s95, %s96
      %p105 = scmp.eq.s32.totalorder %s17, 0
      %p106 = por %p104, %p105
      %p107 = scmp.ne.s32.totalorder %s95, %s96
      %p108 = scmp.eq.s32.totalorder %s18, 1
      %p109 = por %p107, %p108
      %p111 = scmp.ne.s32.totalorder %s96, %s110
      %p112 = scmp.eq.s32.totalorder %s18, 0
      %p113 = por %p111, %p112
      %s115 = sadd.s32 %s114, 1
      %p118 = scmp.eq.s32.totalorder %s12, 1
      %p119 = scmp.ne.s32.totalorder %s114, %s116
      %p120 = scmp.eq.s32.totalorder %s12, 0
      %p121 = por %p119, %p120
      %p122 = scmp.ne.s32.totalorder %s114, %s116
      %p123 = scmp.eq.s32.totalorder %s17, 1
      %p124 = por %p122, %p123
      %p125 = scmp.ne.s32.totalorder %s116, %s117
      %p126 = scmp.eq.s32.totalorder %s17, 0
      %p127 = por %p125, %p126
      %p128 = scmp.ne.s32.totalorder %s116, %s117
      %p129 = scmp.eq.s32.totalorder %s18, 1
      %p130 = por %p128, %p129
      %p132 = scmp.ne.s32.totalorder %s117, %s131
      %p133 = scmp.eq.s32.totalorder %s18, 0
      %p134 = por %p132, %p133
      %s135 = ssub.s32 %s12, %s19
      %p136 = scmp.eq.s32.totalorder %s135, 0
      %s138 = sadd.s32 %s137, 1
      %s139 = scalar_select %p136, %s137, %s138
      %p142 = pneg %p136
      %p143 = scmp.eq.s32.totalorder %s12, 1
      %p144 = por %p142, %p143
      %p145 = scmp.ne.s32.totalorder %s137, %s140
      %p146 = scmp.eq.s32.totalorder %s12, 0
      %p147 = por %p145, %p146
      %p148 = scmp.ne.s32.totalorder %s137, %s140
      %p149 = scmp.eq.s32.totalorder %s17, 1
      %p150 = por %p148, %p149
      %p151 = scmp.ne.s32.totalorder %s140, %s141
      %p152 = scmp.eq.s32.totalorder %s17, 0
      %p153 = por %p151, %p152
      %p154 = scmp.ne.s32.totalorder %s140, %s141
      %p155 = scmp.eq.s32.totalorder %s18, 1
      %p156 = por %p154, %p155
      %p158 = scmp.ne.s32.totalorder %s141, %s157
      %p159 = scmp.eq.s32.totalorder %s18, 0
      %p160 = por %p158, %p159
      %s161 = ssub.s32 %s12, %s19
      %p162 = scmp.eq.s32.totalorder %s161, 0
      %s164 = sadd.s32 %s163, 1
      %s165 = scalar_select %p162, %s163, %s164
      %p168 = pneg %p162
      %p169 = scmp.eq.s32.totalorder %s12, 1
      %p170 = por %p168, %p169
      %p171 = scmp.ne.s32.totalorder %s163, %s166
      %p172 = scmp.eq.s32.totalorder %s12, 0
      %p173 = por %p171, %p172
      %p174 = scmp.ne.s32.totalorder %s163, %s166
      %p175 = scmp.eq.s32.totalorder %s17, 1
      %p176 = por %p174, %p175
      %p177 = scmp.ne.s32.totalorder %s166, %s167
      %p178 = scmp.eq.s32.totalorder %s17, 0
      %p179 = por %p177, %p178
      %p180 = scmp.ne.s32.totalorder %s166, %s167
      %p181 = scmp.eq.s32.totalorder %s18, 1
      %p182 = por %p180, %p181
      %p184 = scmp.ne.s32.totalorder %s167, %s183
      %p185 = scmp.eq.s32.totalorder %s18, 0
      %p186 = por %p184, %p185
      %p187 = scmp.le.s32.totalorder 1, %s12
      %p188 = scmp.lt.s32.totalorder %s12, 3
      %p189 = pnand %p187, %p188
      %p190 = pneg %p189
      // Predicated region
      $region9: #{tpu_custom_call.1} parent=5 // pred_check
        _
      $region10: #{tpu_custom_call.1} parent=5 // pred_check_branch
        %192 = sbr.rel (%p189) target = $region12
      $region11: #{tpu_custom_call.1} parent=5 // pred_region
        %s193 = ssub.s32 %s12, 1
        // Predicated region
        $region13: #{tpu_custom_call.1} parent=11 // pred_check
          %p194 = pneg %p85
        $region14: #{tpu_custom_call.1} parent=11 // pred_check_branch
          %196 = sbr.rel (%p194) target = $region16
        $region15: #{tpu_custom_call.1} parent=11 // pred_region
          _
        $region16: #{tpu_custom_call.1} parent=11 // pred_fallthru
          _
        // Predicated region
        $region17: #{tpu_custom_call.1} parent=11 // pred_check
          %p197 = pneg %p106
        $region18: #{tpu_custom_call.1} parent=11 // pred_check_branch
          %199 = sbr.rel (%p197) target = $region20
        $region19: #{tpu_custom_call.1} parent=11 // pred_region
          _
        $region20: #{tpu_custom_call.1} parent=11 // pred_fallthru
          _
        // Predicated region
        $region21: #{tpu_custom_call.1} parent=11 // pred_check
          %p200 = pneg %p127
        $region22: #{tpu_custom_call.1} parent=11 // pred_check_branch
          %202 = sbr.rel (%p200) target = $region24
        $region23: #{tpu_custom_call.1} parent=11 // pred_region
          _
        $region24: #{tpu_custom_call.1} parent=11 // pred_fallthru
          _
      $region12: #{tpu_custom_call.1} parent=5 // pred_fallthru
        _
      %p203 = scmp.lt.s32.totalorder %s12, 2
      // Predicated region
      $region25: #{tpu_custom_call.1} parent=5 // pred_check
        %p204 = pneg %p203
      $region26: #{tpu_custom_call.1} parent=5 // pred_check_branch
        %206 = sbr.rel (%p204) target = $region28
      $region27: #{tpu_custom_call.1} parent=5 // pred_region
        // Predicated region
        $region29: #{tpu_custom_call.1} parent=27 // pred_check
          %p207 = pneg %p32
        $region30: #{tpu_custom_call.1} parent=27 // pred_check_branch
          %209 = sbr.rel (%p207) target = $region32
        $region31: #{tpu_custom_call.1} parent=27 // pred_region
          %s210 = smul.u32 16, %s12
          %s211 = ssub.s32 20, %s210
          %p212 = scmp.lt.s32.totalorder %s211, 16
          %s213 = scalar_select %p212, %s211, 16
          %s214 = smul.u32 64, %s213
          %p215 = scmp.lt.s32.totalorder %s210, 19
          %s216 = scalar_select %p215, %s210, 19
          %s217 = smul.addr %s216, 4
          %s218 = scalar_lea.vmem %s0, %s217
          %s219 = smul.u32 16, %s12
          %s220 = ssub.s32 20, %s219
          %p221 = scmp.lt.s32.totalorder %s220, 16
          %s222 = scalar_select %p221, %s220, 16
          %s223 = smul.u32 64, %s222
        $region32: #{tpu_custom_call.1} parent=27 // pred_fallthru
          _
        // Predicated region
        $region33: #{tpu_custom_call.1} parent=27 // pred_check
          %p224 = pneg %p58
        $region34: #{tpu_custom_call.1} parent=27 // pred_check_branch
          %226 = sbr.rel (%p224) target = $region36
        $region35: #{tpu_custom_call.1} parent=27 // pred_region
          %s227 = smul.u32 16, %s12
          %s228 = ssub.s32 20, %s227
          %p229 = scmp.lt.s32.totalorder %s228, 16
          %s230 = scalar_select %p229, %s228, 16
          %s231 = smul.u32 64, %s230
          %p232 = scmp.lt.s32.totalorder %s227, 19
          %s233 = scalar_select %p232, %s227, 19
          %s234 = smul.addr %s233, 4
          %s235 = scalar_lea.vmem %s1, %s234
          %s236 = smul.u32 16, %s12
          %s237 = ssub.s32 20, %s236
          %p238 = scmp.lt.s32.totalorder %s237, 16
          %s239 = scalar_select %p238, %s237, 16
          %s240 = smul.u32 64, %s239
        $region36: #{tpu_custom_call.1} parent=27 // pred_fallthru
          _
        // Predicated region
        $region37: #{tpu_custom_call.1} parent=27 // pred_check
          %p241 = pneg %p147
        $region38: #{tpu_custom_call.1} parent=27 // pred_check_branch
          %243 = sbr.rel (%p241) target = $region40
        $region39: #{tpu_custom_call.1} parent=27 // pred_region
          %s244 = smul.u32 16, %s12
          %s245 = ssub.s32 20, %s244
          %p246 = scmp.lt.s32.totalorder %s245, 16
          %s247 = scalar_select %p246, %s245, 16
          %s248 = smul.u32 128, %s247
          %p249 = scmp.lt.s32.totalorder %s244, 19
          %s250 = scalar_select %p249, %s244, 19
          %s251 = smul.addr %s250, 8
          %s252 = scalar_lea.vmem %s5, %s251
          %s253 = smul.u32 16, %s12
          %s254 = ssub.s32 20, %s253
          %p255 = scmp.lt.s32.totalorder %s254, 16
          %s256 = scalar_select %p255, %s254, 16
          %s257 = smul.u32 128, %s256
        $region40: #{tpu_custom_call.1} parent=27 // pred_fallthru
          _
      $region28: #{tpu_custom_call.1} parent=5 // pred_fallthru
        _
      %p258 = scmp.le.s32.totalorder 1, %s12
      %p259 = scmp.lt.s32.totalorder %s12, 3
      %p260 = pnand %p258, %p259
      %p261 = pneg %p260
      // Predicated region
      $region41: #{tpu_custom_call.1} parent=5 // pred_check
        _
      $region42: #{tpu_custom_call.1} parent=5 // pred_check_branch
        %263 = sbr.rel (%p260) target = $region44
      $region43: #{tpu_custom_call.1} parent=5 // pred_region
        %s264 = ssub.s32 %s12, 1
        %s265 = smul.u32 16, %s17
        %s266 = ssub.s32 20, %s265
        %p267 = scmp.lt.s32.totalorder %s266, 16
        %s268 = scalar_select %p267, %s266, 16
        %s269 = smul.u32 64, %s268
        %p270 = scmp.lt.s32.totalorder %s265, 19
        %s271 = scalar_select %p270, %s265, 19
        %s272 = smul.addr %s271, 4
        %s273 = scalar_lea.vmem %s0, %s272
        %p274 = pneg %p38
        %p275 = pneg %p35
        %s276 = smul.u32 16, %s17
        %s277 = ssub.s32 20, %s276
        %p278 = scmp.lt.s32.totalorder %s277, 16
        %s279 = scalar_select %p278, %s277, 16
        %s280 = smul.u32 64, %s279
        %p281 = scmp.lt.s32.totalorder %s276, 19
        %s282 = scalar_select %p281, %s276, 19
        %s283 = smul.addr %s282, 4
        %s284 = scalar_lea.vmem %s1, %s283
        %p285 = pneg %p64
        %p286 = pneg %p61
        %p287 = pneg %p85
        %p288 = pneg %p82
        %p289 = pneg %p106
        %p290 = pneg %p103
        %p291 = pneg %p127
        %p292 = pneg %p124
        %s293 = smul.u32 16, %s17
        %s294 = ssub.s32 20, %s293
        %p295 = scmp.lt.s32.totalorder %s294, 16
        %s296 = scalar_select %p295, %s294, 16
        %s297 = smul.u32 128, %s296
        %p298 = scmp.lt.s32.totalorder %s293, 19
        %s299 = scalar_select %p298, %s293, 19
        %s300 = smul.addr %s299, 8
        %s301 = scalar_lea.vmem %s5, %s300
        %p302 = pneg %p153
        %p303 = pneg %p150
        %p304 = pneg %p179
        %p305 = pneg %p176
        %s306 = sand.u32 %s166, 1
        %s307 = sand.u32 %s166, 1
        %s308 = smul.addr %s307, 128
        %s309 = scalar_lea.vmem [#allocation2], %s308
        %s310 = smul.u32 16, %s17
        %s311 = ssub.s32 20, %s310
        %p312 = scmp.lt.s32.totalorder %s311, 16
        %s313 = scalar_select %p312, %s311, 16
        %s314 = smul.u32 64, %s313
        %p315 = scmp.lt.s32.totalorder %s310, 19
        %s316 = scalar_select %p315, %s310, 19
        %s317 = smul.addr %s316, 4
        %s318 = scalar_lea.vmem %s0, %s317
        %s319 = smul.u32 16, %s17
        %s320 = ssub.s32 20, %s319
        %p321 = scmp.lt.s32.totalorder %s320, 16
        %s322 = scalar_select %p321, %s320, 16
        %s323 = smul.u32 64, %s322
        %s324 = smul.u32 16, %s17
        %s325 = ssub.s32 20, %s324
        %p326 = scmp.lt.s32.totalorder %s325, 16
        %s327 = scalar_select %p326, %s325, 16
        %s328 = smul.u32 64, %s327
        %p329 = scmp.lt.s32.totalorder %s324, 19
        %s330 = scalar_select %p329, %s324, 19
        %s331 = smul.addr %s330, 4
        %s332 = scalar_lea.vmem %s1, %s331
        %s333 = smul.u32 16, %s17
        %s334 = ssub.s32 20, %s333
        %p335 = scmp.lt.s32.totalorder %s334, 16
        %s336 = scalar_select %p335, %s334, 16
        %s337 = smul.u32 64, %s336
        %s338 = smul.u32 16, %s17
        %s339 = ssub.s32 20, %s338
        %p340 = scmp.lt.s32.totalorder %s339, 16
        %s341 = scalar_select %p340, %s339, 16
        %s342 = smul.u32 128, %s341
        %p343 = scmp.lt.s32.totalorder %s338, 19
        %s344 = scalar_select %p343, %s338, 19
        %s345 = smul.addr %s344, 8
        %s346 = scalar_lea.vmem %s5, %s345
        %s347 = smul.u32 16, %s17
        %s348 = ssub.s32 20, %s347
        %p349 = scmp.lt.s32.totalorder %s348, 16
        %s350 = scalar_select %p349, %s348, 16
        %s351 = smul.u32 128, %s350
        %s352 = smul.u32 16, %s17
        %s353 = ssub.s32 20, %s352
        %p354 = scmp.lt.s32.totalorder %s353, 16
        %s355 = scalar_select %p354, %s353, 16
        %s356 = smul.u32 128, %s355
        %v358 = vld [vmem:[%s318] sm:$0xf]
        %v359 = vld [vmem:[%s318 + $0x4] sm:$0xf]
        %v360 = vld [vmem:[%s318 + $0x8] sm:$0xf]
        %v361 = vld [vmem:[%s318 + $0xc] sm:$0xf]
        %v362 = vld [vmem:[%s318 + $0x10] sm:$0xf]
        %v363 = vld [vmem:[%s318 + $0x14] sm:$0xf]
        %v364 = vld [vmem:[%s318 + $0x18] sm:$0xf]
        %v365 = vld [vmem:[%s318 + $0x1c] sm:$0xf]
        %v366 = vld [vmem:[%s318 + $0x20] sm:$0xf]
        %v367 = vld [vmem:[%s318 + $0x24] sm:$0xf]
        %v368 = vld [vmem:[%s318 + $0x28] sm:$0xf]
        %v369 = vld [vmem:[%s318 + $0x2c] sm:$0xf]
        %v370 = vld [vmem:[%s318 + $0x30] sm:$0xf]
        %v371 = vld [vmem:[%s318 + $0x34] sm:$0xf]
        %v372 = vld [vmem:[%s318 + $0x38] sm:$0xf]
        %v373 = vld [vmem:[%s318 + $0x3c] sm:$0xf]
        %v374 = vld [vmem:[%s2] sm:$0xf]
        %v375 = vld [vmem:[%s2 + $0x4] sm:$0xf]
        %v376 = vld [vmem:[%s2 + $0x8] sm:$0xf]
        %v377 = vld [vmem:[%s2 + $0xc] sm:$0xf]
        %v378 = vld [vmem:[%s2 + $0x10] sm:$0xf]
        %v379 = vld [vmem:[%s2 + $0x14] sm:$0xf]
        %v380 = vld [vmem:[%s2 + $0x18] sm:$0xf]
        %v381 = vld [vmem:[%s2 + $0x1c] sm:$0xf]
        %v382 = vld [vmem:[%s2 + $0x20] sm:$0xf]
        %v383 = vld [vmem:[%s2 + $0x24] sm:$0xf]
        %v384 = vld [vmem:[%s2 + $0x28] sm:$0xf]
        %v385 = vld [vmem:[%s2 + $0x2c] sm:$0xf]
        %v386 = vld [vmem:[%s332] sm:$0xf]
        %v387 = vld [vmem:[%s332 + $0x4] sm:$0xf]
        %v388 = vld [vmem:[%s332 + $0x8] sm:$0xf]
        %v389 = vld [vmem:[%s332 + $0xc] sm:$0xf]
        %v390 = vld [vmem:[%s332 + $0x10] sm:$0xf]
        %v391 = vld [vmem:[%s332 + $0x14] sm:$0xf]
        %v392 = vld [vmem:[%s332 + $0x18] sm:$0xf]
        %v393 = vld [vmem:[%s332 + $0x1c] sm:$0xf]
        %v394 = vld [vmem:[%s332 + $0x20] sm:$0xf]
        %v395 = vld [vmem:[%s332 + $0x24] sm:$0xf]
        %v396 = vld [vmem:[%s332 + $0x28] sm:$0xf]
        %v397 = vld [vmem:[%s332 + $0x2c] sm:$0xf]
        %v398 = vld [vmem:[%s332 + $0x30] sm:$0xf]
        %v399 = vld [vmem:[%s332 + $0x34] sm:$0xf]
        %v400 = vld [vmem:[%s332 + $0x38] sm:$0xf]
        %v401 = vld [vmem:[%s332 + $0x3c] sm:$0xf]
        %v402 = vld [vmem:[%s3] sm:$0xf]
        %v403 = vld [vmem:[%s3 + $0x4] sm:$0xf]
        %v404 = vld [vmem:[%s3 + $0x8] sm:$0xf]
        %v405 = vld [vmem:[%s3 + $0xc] sm:$0xf]
        %v422 = vunpack.c.l.b16 %v386
        %v423 = vunpack.c.l.b16 %v387
        %v424 = vunpack.c.l.b16 %v388
        %v425 = vunpack.c.l.b16 %v389
        %v426 = vunpack.c.l.b16 %v390
        %v427 = vunpack.c.l.b16 %v391
        %v428 = vunpack.c.l.b16 %v392
        %v429 = vunpack.c.l.b16 %v393
        %v430 = vunpack.c.l.b16 %v394
        %v431 = vunpack.c.l.b16 %v395
        %v432 = vunpack.c.l.b16 %v396
        %v433 = vunpack.c.l.b16 %v397
        %v434 = vunpack.c.l.b16 %v398
        %v435 = vunpack.c.l.b16 %v399
        %v436 = vunpack.c.l.b16 %v400
        %v437 = vunpack.c.l.b16 %v401
        %v438 = vpack.c.b16 %v423, %v422
        %v439 = vpack.c.b16 %v425, %v424
        %v440 = vpack.c.b16 %v427, %v426
        %v441 = vpack.c.b16 %v429, %v428
        %v442 = vpack.c.b16 %v431, %v430
        %v443 = vpack.c.b16 %v433, %v432
        %v444 = vpack.c.b16 %v435, %v434
        %v445 = vpack.c.b16 %v437, %v436
        %v450 = vunpack.c.l.b16 %v402
        %v451 = vunpack.c.l.b16 %v403
        %v452 = vunpack.c.l.b16 %v404
        %v453 = vunpack.c.l.b16 %v405
        %v454 = vpack.c.b16 %v451, %v450
        %v455 = vpack.c.b16 %v453, %v452
        %vm458 = vcmask 261120
        %v460 = vsel %vm458, %v438, 0
        %v463 = vsel %vm458, %v439, 0
        %v466 = vsel %vm458, %v440, 0
        %v469 = vsel %vm458, %v441, 0
        %v472 = vsel %vm458, %v442, 0
        %v475 = vsel %vm458, %v443, 0
        %v478 = vsel %vm458, %v444, 0
        %v481 = vsel %vm458, %v445, 0
        %483 = vmatprep.subr.bf16.mxu0 0
        %484 = vmatpush1.bf16.msra.mxu0 0
        %485 = vmatprep.subr.bf16.mxu0 0
        %486 = vmatpush1.bf16.msra.mxu0 0
        %487 = vmatprep.subr.bf16.mxu0 0
        %488 = vmatpush1.bf16.msra.mxu0 0
        %489 = vmatprep.subr.bf16.mxu0 0
        %490 = vmatpush1.bf16.msra.mxu0 0
        %491 = vmatprep.subr.bf16.mxu0 0
        %492 = vmatpush1.bf16.msra.mxu0 0
        %493 = vmatprep.subr.bf16.mxu0 0
        %494 = vmatpush1.bf16.msra.mxu0 0
        %495 = vmatprep.subr.bf16.mxu0 0
        %496 = vmatpush1.bf16.msra.mxu0 %v455
        %497 = vmatprep.subr.bf16.mxu0 0
        %498 = vmatpush1.bf16.msra.mxu0 %v454
        %499 = vmatprep.subr.bf16.mxu0 0
        %500 = vmatpush2.bf16.msra.mxu0 0
        %501 = vmatprep.subr.bf16.mxu0 0
        %502 = vmatpush2.bf16.msra.mxu0 0
        %503 = vmatprep.subr.bf16.mxu0 0
        %504 = vmatpush2.bf16.msra.mxu0 0
        %505 = vmatprep.subr.bf16.mxu0 0
        %506 = vmatpush2.bf16.msra.mxu0 0
        %507 = vmatprep.subr.bf16.mxu0 0
        %508 = vmatpush2.bf16.msra.mxu0 0
        %509 = vmatprep.subr.bf16.mxu0 0
        %510 = vmatpush2.bf16.msra.mxu0 0
        %511 = vmatprep.subr.bf16.mxu0 0
        %512 = vmatpush2.bf16.msra.mxu0 0
        %513 = vmatprep.subr.bf16.mxu0 0
        %514 = vmatpush2.bf16.msra.mxu0 0
        %515 = vmatprep.mubr.bf16.mxu0 0
        %516 = vmatmul.mubr.bf16.gmra.mxu0 %v460
        %v517 = vpop.f32.mrf.mxu0
        %v518 = vadd.f32 0.0, %v517
        %v519 = vpop.f32.mrf.mxu0
        %v520 = vpop.f32.mrf.mxu0
        %v521 = vadd.f32 0.0, %v520
        %v522 = vpop.f32.mrf.mxu0
        %523 = vmatprep.mubr.bf16.mxu0 0
        %524 = vmatmul.mubr.bf16.gmra.mxu0 %v463
        %v525 = vpop.f32.mrf.mxu0
        %v526 = vadd.f32 0.0, %v525
        %v527 = vpop.f32.mrf.mxu0
        %v528 = vpop.f32.mrf.mxu0
        %v529 = vadd.f32 0.0, %v528
        %v530 = vpop.f32.mrf.mxu0
        %531 = vmatprep.mubr.bf16.mxu0 0
        %532 = vmatmul.mubr.bf16.gmra.mxu0 %v466
        %v533 = vpop.f32.mrf.mxu0
        %v534 = vadd.f32 0.0, %v533
        %v535 = vpop.f32.mrf.mxu0
        %v536 = vpop.f32.mrf.mxu0
        %v537 = vadd.f32 0.0, %v536
        %v538 = vpop.f32.mrf.mxu0
        %539 = vmatprep.mubr.bf16.mxu0 0
        %540 = vmatmul.mubr.bf16.gmra.mxu0 %v469
        %v541 = vpop.f32.mrf.mxu0
        %v542 = vadd.f32 0.0, %v541
        %v543 = vpop.f32.mrf.mxu0
        %v544 = vpop.f32.mrf.mxu0
        %v545 = vadd.f32 0.0, %v544
        %v546 = vpop.f32.mrf.mxu0
        %547 = vmatprep.mubr.bf16.mxu0 0
        %548 = vmatmul.mubr.bf16.gmra.mxu0 %v472
        %v549 = vpop.f32.mrf.mxu0
        %v550 = vadd.f32 0.0, %v549
        %v551 = vpop.f32.mrf.mxu0
        %v552 = vpop.f32.mrf.mxu0
        %v553 = vadd.f32 0.0, %v552
        %v554 = vpop.f32.mrf.mxu0
        %555 = vmatprep.mubr.bf16.mxu0 0
        %556 = vmatmul.mubr.bf16.gmra.mxu0 %v475
        %v557 = vpop.f32.mrf.mxu0
        %v558 = vadd.f32 0.0, %v557
        %v559 = vpop.f32.mrf.mxu0
        %v560 = vpop.f32.mrf.mxu0
        %v561 = vadd.f32 0.0, %v560
        %v562 = vpop.f32.mrf.mxu0
        %563 = vmatprep.mubr.bf16.mxu0 0
        %564 = vmatmul.mubr.bf16.gmra.mxu0 %v478
        %v565 = vpop.f32.mrf.mxu0
        %v566 = vadd.f32 0.0, %v565
        %v567 = vpop.f32.mrf.mxu0
        %v568 = vpop.f32.mrf.mxu0
        %v569 = vadd.f32 0.0, %v568
        %v570 = vpop.f32.mrf.mxu0
        %571 = vmatprep.mubr.bf16.mxu0 0
        %572 = vmatmul.mubr.bf16.gmra.mxu0 %v481
        %v573 = vpop.f32.mrf.mxu0
        %v574 = vadd.f32 0.0, %v573
        %v575 = vpop.f32.mrf.mxu0
        %v576 = vpop.f32.mrf.mxu0
        %v577 = vadd.f32 0.0, %v576
        %v578 = vpop.f32.mrf.mxu0
        %579 = vdwg.mxu0
        %v596 = vunpack.c.l.b16 %v358
        %v597 = vunpack.c.l.b16 %v359
        %v598 = vunpack.c.l.b16 %v360
        %v599 = vunpack.c.l.b16 %v361
        %v600 = vunpack.c.l.b16 %v362
        %v601 = vunpack.c.l.b16 %v363
        %v602 = vunpack.c.l.b16 %v364
        %v603 = vunpack.c.l.b16 %v365
        %v604 = vunpack.c.l.b16 %v366
        %v605 = vunpack.c.l.b16 %v367
        %v606 = vunpack.c.l.b16 %v368
        %v607 = vunpack.c.l.b16 %v369
        %v608 = vunpack.c.l.b16 %v370
        %v609 = vunpack.c.l.b16 %v371
        %v610 = vunpack.c.l.b16 %v372
        %v611 = vunpack.c.l.b16 %v373
        %v612 = vpack.c.b16 %v597, %v596
        %v613 = vpack.c.b16 %v599, %v598
        %v614 = vpack.c.b16 %v601, %v600
        %v615 = vpack.c.b16 %v603, %v602
        %v616 = vpack.c.b16 %v605, %v604
        %v617 = vpack.c.b16 %v607, %v606
        %v618 = vpack.c.b16 %v609, %v608
        %v619 = vpack.c.b16 %v611, %v610
        %v632 = vunpack.c.l.b16 %v374
        %v633 = vunpack.c.l.b16 %v375
        %v634 = vunpack.c.l.b16 %v376
        %v635 = vunpack.c.l.b16 %v377
        %v636 = vunpack.c.l.b16 %v378
        %v637 = vunpack.c.l.b16 %v379
        %v638 = vunpack.c.l.b16 %v380
        %v639 = vunpack.c.l.b16 %v381
        %v640 = vunpack.c.l.b16 %v382
        %v641 = vunpack.c.l.b16 %v383
        %v642 = vunpack.c.l.b16 %v384
        %v643 = vunpack.c.l.b16 %v385
        %v644 = vpack.c.b16 %v633, %v632
        %v645 = vpack.c.b16 %v635, %v634
        %v646 = vpack.c.b16 %v637, %v636
        %v647 = vpack.c.b16 %v639, %v638
        %v648 = vpack.c.b16 %v641, %v640
        %v649 = vpack.c.b16 %v643, %v642
        %vm656 = vcmask 785408
        %v658 = vsel %vm656, %v612, 0
        %v661 = vsel %vm656, %v613, 0
        %v664 = vsel %vm656, %v614, 0
        %v667 = vsel %vm656, %v615, 0
        %v670 = vsel %vm656, %v616, 0
        %v673 = vsel %vm656, %v617, 0
        %v676 = vsel %vm656, %v618, 0
        %v679 = vsel %vm656, %v619, 0
        %681 = vmatprep.subr.bf16.mxu0 0
        %682 = vmatpush1.bf16.msra.mxu0 0
        %683 = vmatprep.subr.bf16.mxu0 0
        %684 = vmatpush1.bf16.msra.mxu0 0
        %685 = vmatprep.subr.bf16.mxu0 0
        %686 = vmatpush1.bf16.msra.mxu0 %v649
        %687 = vmatprep.subr.bf16.mxu0 0
        %688 = vmatpush1.bf16.msra.mxu0 %v648
        %689 = vmatprep.subr.bf16.mxu0 0
        %690 = vmatpush1.bf16.msra.mxu0 %v647
        %691 = vmatprep.subr.bf16.mxu0 0
        %692 = vmatpush1.bf16.msra.mxu0 %v646
        %693 = vmatprep.subr.bf16.mxu0 0
        %694 = vmatpush1.bf16.msra.mxu0 %v645
        %695 = vmatprep.subr.bf16.mxu0 0
        %696 = vmatpush1.bf16.msra.mxu0 %v644
        %697 = vmatprep.subr.bf16.mxu0 0
        %698 = vmatpush2.bf16.msra.mxu0 0
        %699 = vmatprep.subr.bf16.mxu0 0
        %700 = vmatpush2.bf16.msra.mxu0 0
        %701 = vmatprep.subr.bf16.mxu0 0
        %702 = vmatpush2.bf16.msra.mxu0 0
        %703 = vmatprep.subr.bf16.mxu0 0
        %704 = vmatpush2.bf16.msra.mxu0 0
        %705 = vmatprep.subr.bf16.mxu0 0
        %706 = vmatpush2.bf16.msra.mxu0 0
        %707 = vmatprep.subr.bf16.mxu0 0
        %708 = vmatpush2.bf16.msra.mxu0 0
        %709 = vmatprep.subr.bf16.mxu0 0
        %710 = vmatpush2.bf16.msra.mxu0 0
        %711 = vmatprep.subr.bf16.mxu0 0
        %712 = vmatpush2.bf16.msra.mxu0 0
        %713 = vmatprep.mubr.bf16.mxu0 0
        %714 = vmatmul.mubr.bf16.gmra.mxu0 %v658
        %v715 = vpop.f32.mrf.mxu0
        %v716 = vadd.f32 %v518, %v715
        %v717 = vpop.f32.mrf.mxu0
        %v718 = vpop.f32.mrf.mxu0
        %v719 = vadd.f32 %v521, %v718
        %v720 = vpop.f32.mrf.mxu0
        %721 = vmatprep.mubr.bf16.mxu0 0
        %722 = vmatmul.mubr.bf16.gmra.mxu0 %v661
        %v723 = vpop.f32.mrf.mxu0
        %v724 = vadd.f32 %v526, %v723
        %v725 = vpop.f32.mrf.mxu0
        %v726 = vpop.f32.mrf.mxu0
        %v727 = vadd.f32 %v529, %v726
        %v728 = vpop.f32.mrf.mxu0
        %729 = vmatprep.mubr.bf16.mxu0 0
        %730 = vmatmul.mubr.bf16.gmra.mxu0 %v664
        %v731 = vpop.f32.mrf.mxu0
        %v732 = vadd.f32 %v534, %v731
        %v733 = vpop.f32.mrf.mxu0
        %v734 = vpop.f32.mrf.mxu0
        %v735 = vadd.f32 %v537, %v734
        %v736 = vpop.f32.mrf.mxu0
        %737 = vmatprep.mubr.bf16.mxu0 0
        %738 = vmatmul.mubr.bf16.gmra.mxu0 %v667
        %v739 = vpop.f32.mrf.mxu0
        %v740 = vadd.f32 %v542, %v739
        %v741 = vpop.f32.mrf.mxu0
        %v742 = vpop.f32.mrf.mxu0
        %v743 = vadd.f32 %v545, %v742
        %v744 = vpop.f32.mrf.mxu0
        %745 = vmatprep.mubr.bf16.mxu0 0
        %746 = vmatmul.mubr.bf16.gmra.mxu0 %v670
        %v747 = vpop.f32.mrf.mxu0
        %v748 = vadd.f32 %v550, %v747
        %v749 = vpop.f32.mrf.mxu0
        %v750 = vpop.f32.mrf.mxu0
        %v751 = vadd.f32 %v553, %v750
        %v752 = vpop.f32.mrf.mxu0
        %753 = vmatprep.mubr.bf16.mxu0 0
        %754 = vmatmul.mubr.bf16.gmra.mxu0 %v673
        %v755 = vpop.f32.mrf.mxu0
        %v756 = vadd.f32 %v558, %v755
        %v757 = vpop.f32.mrf.mxu0
        %v758 = vpop.f32.mrf.mxu0
        %v759 = vadd.f32 %v561, %v758
        %v760 = vpop.f32.mrf.mxu0
        %761 = vmatprep.mubr.bf16.mxu0 0
        %762 = vmatmul.mubr.bf16.gmra.mxu0 %v676
        %v763 = vpop.f32.mrf.mxu0
        %v764 = vadd.f32 %v566, %v763
        %v765 = vpop.f32.mrf.mxu0
        %v766 = vpop.f32.mrf.mxu0
        %v767 = vadd.f32 %v569, %v766
        %v768 = vpop.f32.mrf.mxu0
        %769 = vmatprep.mubr.bf16.mxu0 0
        %770 = vmatmul.mubr.bf16.gmra.mxu0 %v679
        %v771 = vpop.f32.mrf.mxu0
        %v772 = vadd.f32 %v574, %v771
        %v773 = vpop.f32.mrf.mxu0
        %v774 = vpop.f32.mrf.mxu0
        %v775 = vadd.f32 %v577, %v774
        %v776 = vpop.f32.mrf.mxu0
        %777 = vdwg.mxu0
        %v778 = vld [vmem:[%s4] sm:$0x1]
        %v780 = vlaneseq
        %v781 = vshrl.u32 %v780, 7
        %v782 = vsub.s32 0, %v781
        %v783 = vrot.slane %v778, %v782
        %v785 = vadd.f32 %v716, %v783
        %v786 = vadd.f32 %v719, %v783
        %v787 = vadd.f32 %v724, %v783
        %v788 = vadd.f32 %v727, %v783
        %v789 = vadd.f32 %v732, %v783
        %v790 = vadd.f32 %v735, %v783
        %v791 = vadd.f32 %v740, %v783
        %v792 = vadd.f32 %v743, %v783
        %v793 = vadd.f32 %v748, %v783
        %v794 = vadd.f32 %v751, %v783
        %v795 = vadd.f32 %v756, %v783
        %v796 = vadd.f32 %v759, %v783
        %v797 = vadd.f32 %v764, %v783
        %v798 = vadd.f32 %v767, %v783
        %v799 = vadd.f32 %v772, %v783
        %v800 = vadd.f32 %v775, %v783
        %v801 = vmax.f32 %v785, 0.0
        %v802 = vmax.f32 %v786, 0.0
        %v803 = vmax.f32 %v787, 0.0
        %v804 = vmax.f32 %v788, 0.0
        %v805 = vmax.f32 %v789, 0.0
        %v806 = vmax.f32 %v790, 0.0
        %v807 = vmax.f32 %v791, 0.0
        %v808 = vmax.f32 %v792, 0.0
        %v809 = vmax.f32 %v793, 0.0
        %v810 = vmax.f32 %v794, 0.0
        %v811 = vmax.f32 %v795, 0.0
        %v812 = vmax.f32 %v796, 0.0
        %v813 = vmax.f32 %v797, 0.0
        %v814 = vmax.f32 %v798, 0.0
        %v815 = vmax.f32 %v799, 0.0
        %v816 = vmax.f32 %v800, 0.0
        %v817 = vld [vmem:[%s346] sm:$0xff]
        %v818 = vld [vmem:[%s346 + $0x8] sm:$0xff]
        %v819 = vld [vmem:[%s346 + $0x10] sm:$0xff]
        %v820 = vld [vmem:[%s346 + $0x18] sm:$0xff]
        %v821 = vld [vmem:[%s346 + $0x20] sm:$0xff]
        %v822 = vld [vmem:[%s346 + $0x28] sm:$0xff]
        %v823 = vld [vmem:[%s346 + $0x30] sm:$0xff]
        %v824 = vld [vmem:[%s346 + $0x38] sm:$0xff]
        %v825 = vld [vmem:[%s346 + $0x40] sm:$0xff]
        %v826 = vld [vmem:[%s346 + $0x48] sm:$0xff]
        %v827 = vld [vmem:[%s346 + $0x50] sm:$0xff]
        %v828 = vld [vmem:[%s346 + $0x58] sm:$0xff]
        %v829 = vld [vmem:[%s346 + $0x60] sm:$0xff]
        %v830 = vld [vmem:[%s346 + $0x68] sm:$0xff]
        %v831 = vld [vmem:[%s346 + $0x70] sm:$0xff]
        %v832 = vld [vmem:[%s346 + $0x78] sm:$0xff]
        %v833 = vadd.f32 %v801, %v817
        %v834 = vadd.f32 %v802, %v818
        %v835 = vadd.f32 %v803, %v819
        %v836 = vadd.f32 %v804, %v820
        %v837 = vadd.f32 %v805, %v821
        %v838 = vadd.f32 %v806, %v822
        %v839 = vadd.f32 %v807, %v823
        %v840 = vadd.f32 %v808, %v824
        %v841 = vadd.f32 %v809, %v825
        %v842 = vadd.f32 %v810, %v826
        %v843 = vadd.f32 %v811, %v827
        %v844 = vadd.f32 %v812, %v828
        %v845 = vadd.f32 %v813, %v829
        %v846 = vadd.f32 %v814, %v830
        %v847 = vadd.f32 %v815, %v831
        %v848 = vadd.f32 %v816, %v832
        %vm849 = vcmask 523264
        %850 = vst.msk [vmem:[%s309] sm:$0xff] %vm849, %v833
        %851 = vst.msk [vmem:[%s309 + $0x8] sm:$0xff] %vm849, %v834
        %852 = vst.msk [vmem:[%s309 + $0x10] sm:$0xff] %vm849, %v835
        %853 = vst.msk [vmem:[%s309 + $0x18] sm:$0xff] %vm849, %v836
        %854 = vst.msk [vmem:[%s309 + $0x20] sm:$0xff] %vm849, %v837
        %855 = vst.msk [vmem:[%s309 + $0x28] sm:$0xff] %vm849, %v838
        %856 = vst.msk [vmem:[%s309 + $0x30] sm:$0xff] %vm849, %v839
        %857 = vst.msk [vmem:[%s309 + $0x38] sm:$0xff] %vm849, %v840
        %858 = vst.msk [vmem:[%s309 + $0x40] sm:$0xff] %vm849, %v841
        %859 = vst.msk [vmem:[%s309 + $0x48] sm:$0xff] %vm849, %v842
        %860 = vst.msk [vmem:[%s309 + $0x50] sm:$0xff] %vm849, %v843
        %861 = vst.msk [vmem:[%s309 + $0x58] sm:$0xff] %vm849, %v844
        %862 = vst.msk [vmem:[%s309 + $0x60] sm:$0xff] %vm849, %v845
        %863 = vst.msk [vmem:[%s309 + $0x68] sm:$0xff] %vm849, %v846
        %864 = vst.msk [vmem:[%s309 + $0x70] sm:$0xff] %vm849, %v847
        %865 = vst.msk [vmem:[%s309 + $0x78] sm:$0xff] %vm849, %v848
        %s866 = sand.u32 %s166, 1
        %s867 = sand.u32 %s166, 1
        %s868 = smul.addr %s867, 128
        %s869 = scalar_lea.vmem [#allocation2], %s868
        // Predicated region
        $region45: #{tpu_custom_call.1} parent=43 // pred_check
          %p870 = pneg %p176
        $region46: #{tpu_custom_call.1} parent=43 // pred_check_branch
          %872 = sbr.rel (%p870) target = $region48
        $region47: #{tpu_custom_call.1} parent=43 // pred_region
          %s873 = smul.u32 16, %s17
          %s874 = ssub.s32 20, %s873
          %p875 = scmp.lt.s32.totalorder %s874, 16
          %s876 = scalar_select %p875, %s874, 16
          %s877 = smul.u32 128, %s876
          %p878 = scmp.ne.s32.totalorder 0, %s877
          %s879 = smul.addr %s873, 8
          %s880 = scalar_lea.vmem %s6, %s879
          // Predicated region
          $region49: #{tpu_custom_call.1} parent=47 // pred_check
            %p881 = pneg %p878
          $region50: #{tpu_custom_call.1} parent=47 // pred_check_branch
            %883 = sbr.rel (%p881) target = $region52
          $region51: #{tpu_custom_call.1} parent=47 // pred_region
            // Predicated region
            $region53: #{tpu_custom_call.1} parent=51 // pred_check
              _
            $region54: #{tpu_custom_call.1} parent=51 // pred_check_branch
              %885 = sbr.rel (0) target = $region56
            $region55: #{tpu_custom_call.1} parent=51 // pred_region
              // Predicated region
              $region75: #{tpu_custom_call.1} parent=55 // pred_check
                _
              $region76: #{tpu_custom_call.1} parent=55 // pred_check_branch
                %965 = sbr.rel (0) target = $region78
              $region77: #{tpu_custom_call.1} parent=55 // pred_region
                %s966 = sshrl.u32 %s876, 4
                // While loop
                $region79: #{tpu_custom_call.1} parent=77 // loop_pre_header
                  _
                $region80: #{tpu_custom_call.1} parent=77 // loop_header
                  %s968 = sphi 0, %s970
                  %p969 = scmp.ge.s32.totalorder %s968, %s966
                  %s973 = sphi 0, %s1010
                  %s974 = sphi %s869, %s1013
                  %s975 = sphi %s880, %s1014
                $region81: #{tpu_custom_call.1} parent=77 // loop_header_branch
                  %972 = sbr.rel (%p969) target = $region85
                $region82: #{tpu_custom_call.1} parent=77 // loop_body
                  %v976 = vld [vmem:[%s974] sm:$0xff]
                  %977 = vst [vmem:[%s975] sm:$0xff] %v976
                  %v978 = vld [vmem:[%s974 + $0x8] sm:$0xff]
                  %979 = vst [vmem:[%s975 + $0x8] sm:$0xff] %v978
                  %v980 = vld [vmem:[%s974 + $0x10] sm:$0xff]
                  %981 = vst [vmem:[%s975 + $0x10] sm:$0xff] %v980
                  %v982 = vld [vmem:[%s974 + $0x18] sm:$0xff]
                  %983 = vst [vmem:[%s975 + $0x18] sm:$0xff] %v982
                  %v984 = vld [vmem:[%s974 + $0x20] sm:$0xff]
                  %985 = vst [vmem:[%s975 + $0x20] sm:$0xff] %v984
                  %v986 = vld [vmem:[%s974 + $0x28] sm:$0xff]
                  %987 = vst [vmem:[%s975 + $0x28] sm:$0xff] %v986
                  %v988 = vld [vmem:[%s974 + $0x30] sm:$0xff]
                  %989 = vst [vmem:[%s975 + $0x30] sm:$0xff] %v988
                  %v990 = vld [vmem:[%s974 + $0x38] sm:$0xff]
                  %991 = vst [vmem:[%s975 + $0x38] sm:$0xff] %v990
                  %v992 = vld [vmem:[%s974 + $0x40] sm:$0xff]
                  %993 = vst [vmem:[%s975 + $0x40] sm:$0xff] %v992
                  %v994 = vld [vmem:[%s974 + $0x48] sm:$0xff]
                  %995 = vst [vmem:[%s975 + $0x48] sm:$0xff] %v994
                  %v996 = vld [vmem:[%s974 + $0x50] sm:$0xff]
                  %997 = vst [vmem:[%s975 + $0x50] sm:$0xff] %v996
                  %v998 = vld [vmem:[%s974 + $0x58] sm:$0xff]
                  %999 = vst [vmem:[%s975 + $0x58] sm:$0xff] %v998
                  %v1000 = vld [vmem:[%s974 + $0x60] sm:$0xff]
                  %1001 = vst [vmem:[%s975 + $0x60] sm:$0xff] %v1000
                  %v1002 = vld [vmem:[%s974 + $0x68] sm:$0xff]
                  %1003 = vst [vmem:[%s975 + $0x68] sm:$0xff] %v1002
                  %v1004 = vld [vmem:[%s974 + $0x70] sm:$0xff]
                  %1005 = vst [vmem:[%s975 + $0x70] sm:$0xff] %v1004
                  %v1006 = vld [vmem:[%s974 + $0x78] sm:$0xff]
                  %1007 = vst [vmem:[%s975 + $0x78] sm:$0xff] %v1006
                  %s1008 = sadd.s32 1, %s973
                  %p1009 = scmp.ge.s32.totalorder %s1008, %s966
                  %s1010 = scalar_select %p1009, 0, %s1008
                  %s1011 = smul.u32 %s1010, 128
                  %s1012 = smul.u32 %s1010, 128
                  %s1013 = scalar_lea.vmem %s869, %s1011 [#allocation2]
                  %s1014 = scalar_lea.vmem %s880, %s1012
                $region83: #{tpu_custom_call.1} parent=77 // loop_footer
                  %s970 = sadd.s32 %s968, 1
                $region84: #{tpu_custom_call.1} parent=77 // loop_footer_branch
                  %967 = sbr.rel target = $region80
                $region85: #{tpu_custom_call.1} parent=77 // loop_exit
                  _
                %s1015 = sshrl.u32 %s876, 4
                %s1016 = sand.u32 %s876, 15
                %s1017 = smul.u32 %s1015, 16
                %s1018 = smul.u32 8, %s1017
                %s1019 = scalar_lea.vmem %s869, %s1018 [#allocation2]
                %s1020 = smul.u32 8, %s1017
                %s1021 = scalar_lea.vmem %s880, %s1020
                // While loop
                $region86: #{tpu_custom_call.1} parent=77 // loop_pre_header
                  _
                $region87: #{tpu_custom_call.1} parent=77 // loop_header
                  %s1023 = sphi 0, %s1025
                  %p1024 = scmp.ge.s32.totalorder %s1023, %s1016
                  %s1028 = sphi 0, %s1035
                  %s1029 = sphi %s1019, %s1038
                  %s1030 = sphi %s1021, %s1039
                $region88: #{tpu_custom_call.1} parent=77 // loop_header_branch
                  %1027 = sbr.rel (%p1024) target = $region92
                $region89: #{tpu_custom_call.1} parent=77 // loop_body
                  %v1031 = vld [vmem:[%s1029] sm:$0xff]
                  %1032 = vst [vmem:[%s1030] sm:$0xff] %v1031
                  %s1033 = sadd.s32 1, %s1028
                  %p1034 = scmp.ge.s32.totalorder %s1033, %s1016
                  %s1035 = scalar_select %p1034, 0, %s1033
                  %s1036 = smul.u32 %s1035, 8
                  %s1037 = smul.u32 %s1035, 8
                  %s1038 = scalar_lea.vmem %s1019, %s1036 [#allocation2]
                  %s1039 = scalar_lea.vmem %s1021, %s1037
                $region90: #{tpu_custom_call.1} parent=77 // loop_footer
                  %s1025 = sadd.s32 %s1023, 1
                $region91: #{tpu_custom_call.1} parent=77 // loop_footer_branch
                  %1022 = sbr.rel target = $region87
                $region92: #{tpu_custom_call.1} parent=77 // loop_exit
                  _
              $region78: #{tpu_custom_call.1} parent=55 // pred_fallthru
                _
              // Predicated region
              $region93: #{tpu_custom_call.1} parent=55 // pred_check
                _
              $region94: #{tpu_custom_call.1} parent=55 // pred_check_branch
                %1041 = sbr.rel target = $region96
              $region95: #{tpu_custom_call.1} parent=55 // pred_region
                _
              $region96: #{tpu_custom_call.1} parent=55 // pred_fallthru
                _
            $region56: #{tpu_custom_call.1} parent=51 // pred_fallthru
              _
            // Predicated region
            $region57: #{tpu_custom_call.1} parent=51 // pred_check
              _
            $region58: #{tpu_custom_call.1} parent=51 // pred_check_branch
              %887 = sbr.rel target = $region60
            $region59: #{tpu_custom_call.1} parent=51 // pred_region
              %s889 = ssub.s32 256, 1
              %s890 = sshrl.u32 %s876, 4
              // While loop
              $region61: #{tpu_custom_call.1} parent=59 // loop_pre_header
                _
              $region62: #{tpu_custom_call.1} parent=59 // loop_header
                %s892 = sphi 0, %s894
                %p893 = scmp.ge.s32.totalorder %s892, %s890
                %s897 = sphi 0, %s934
                %s898 = sphi %s869, %s937
                %s899 = sphi %s880, %s938
              $region63: #{tpu_custom_call.1} parent=59 // loop_header_branch
                %896 = sbr.rel (%p893) target = $region67
              $region64: #{tpu_custom_call.1} parent=59 // loop_body
                %v900 = vld [vmem:[%s898] sm:%s889]
                %901 = vst [vmem:[%s899] sm:%s889] %v900
                %v902 = vld [vmem:[%s898 + $0x8] sm:%s889]
                %903 = vst [vmem:[%s899 + $0x8] sm:%s889] %v902
                %v904 = vld [vmem:[%s898 + $0x10] sm:%s889]
                %905 = vst [vmem:[%s899 + $0x10] sm:%s889] %v904
                %v906 = vld [vmem:[%s898 + $0x18] sm:%s889]
                %907 = vst [vmem:[%s899 + $0x18] sm:%s889] %v906
                %v908 = vld [vmem:[%s898 + $0x20] sm:%s889]
                %909 = vst [vmem:[%s899 + $0x20] sm:%s889] %v908
                %v910 = vld [vmem:[%s898 + $0x28] sm:%s889]
                %911 = vst [vmem:[%s899 + $0x28] sm:%s889] %v910
                %v912 = vld [vmem:[%s898 + $0x30] sm:%s889]
                %913 = vst [vmem:[%s899 + $0x30] sm:%s889] %v912
                %v914 = vld [vmem:[%s898 + $0x38] sm:%s889]
                %915 = vst [vmem:[%s899 + $0x38] sm:%s889] %v914
                %v916 = vld [vmem:[%s898 + $0x40] sm:%s889]
                %917 = vst [vmem:[%s899 + $0x40] sm:%s889] %v916
                %v918 = vld [vmem:[%s898 + $0x48] sm:%s889]
                %919 = vst [vmem:[%s899 + $0x48] sm:%s889] %v918
                %v920 = vld [vmem:[%s898 + $0x50] sm:%s889]
                %921 = vst [vmem:[%s899 + $0x50] sm:%s889] %v920
                %v922 = vld [vmem:[%s898 + $0x58] sm:%s889]
                %923 = vst [vmem:[%s899 + $0x58] sm:%s889] %v922
                %v924 = vld [vmem:[%s898 + $0x60] sm:%s889]
                %925 = vst [vmem:[%s899 + $0x60] sm:%s889] %v924
                %v926 = vld [vmem:[%s898 + $0x68] sm:%s889]
                %927 = vst [vmem:[%s899 + $0x68] sm:%s889] %v926
                %v928 = vld [vmem:[%s898 + $0x70] sm:%s889]
                %929 = vst [vmem:[%s899 + $0x70] sm:%s889] %v928
                %v930 = vld [vmem:[%s898 + $0x78] sm:%s889]
                %931 = vst [vmem:[%s899 + $0x78] sm:%s889] %v930
                %s932 = sadd.s32 1, %s897
                %p933 = scmp.ge.s32.totalorder %s932, %s890
                %s934 = scalar_select %p933, 0, %s932
                %s935 = smul.u32 %s934, 128
                %s936 = smul.u32 %s934, 128
                %s937 = scalar_lea.vmem %s869, %s935 [#allocation2]
                %s938 = scalar_lea.vmem %s880, %s936
              $region65: #{tpu_custom_call.1} parent=59 // loop_footer
                %s894 = sadd.s32 %s892, 1
              $region66: #{tpu_custom_call.1} parent=59 // loop_footer_branch
                %891 = sbr.rel target = $region62
              $region67: #{tpu_custom_call.1} parent=59 // loop_exit
                _
              %s939 = sshrl.u32 %s876, 4
              %s940 = sand.u32 %s876, 15
              %s941 = smul.u32 %s939, 16
              %s942 = smul.u32 8, %s941
              %s943 = scalar_lea.vmem %s869, %s942 [#allocation2]
              %s944 = smul.u32 8, %s941
              %s945 = scalar_lea.vmem %s880, %s944
              // While loop
              $region68: #{tpu_custom_call.1} parent=59 // loop_pre_header
                _
              $region69: #{tpu_custom_call.1} parent=59 // loop_header
                %s947 = sphi 0, %s949
                %p948 = scmp.ge.s32.totalorder %s947, %s940
                %s952 = sphi 0, %s959
                %s953 = sphi %s943, %s962
                %s954 = sphi %s945, %s963
              $region70: #{tpu_custom_call.1} parent=59 // loop_header_branch
                %951 = sbr.rel (%p948) target = $region74
              $region71: #{tpu_custom_call.1} parent=59 // loop_body
                %v955 = vld [vmem:[%s953] sm:%s889]
                %956 = vst [vmem:[%s954] sm:%s889] %v955
                %s957 = sadd.s32 1, %s952
                %p958 = scmp.ge.s32.totalorder %s957, %s940
                %s959 = scalar_select %p958, 0, %s957
                %s960 = smul.u32 %s959, 8
                %s961 = smul.u32 %s959, 8
                %s962 = scalar_lea.vmem %s943, %s960 [#allocation2]
                %s963 = scalar_lea.vmem %s945, %s961
              $region72: #{tpu_custom_call.1} parent=59 // loop_footer
                %s949 = sadd.s32 %s947, 1
              $region73: #{tpu_custom_call.1} parent=59 // loop_footer_branch
                %946 = sbr.rel target = $region69
              $region74: #{tpu_custom_call.1} parent=59 // loop_exit
                _
            $region60: #{tpu_custom_call.1} parent=51 // pred_fallthru
              _
          $region52: #{tpu_custom_call.1} parent=47 // pred_fallthru
            _
          %1042 = vnop
        $region48: #{tpu_custom_call.1} parent=43 // pred_fallthru
          _
      $region44: #{tpu_custom_call.1} parent=5 // pred_fallthru
        _
      %p1043 = scmp.le.s32.totalorder 2, %s12
      // Predicated region
      $region97: #{tpu_custom_call.1} parent=5 // pred_check
        %p1044 = pneg %p1043
      $region98: #{tpu_custom_call.1} parent=5 // pred_check_branch
        %1046 = sbr.rel (%p1044) target = $region100
      $region99: #{tpu_custom_call.1} parent=5 // pred_region
        %s1047 = ssub.s32 %s12, 2
        // Predicated region
        $region101: #{tpu_custom_call.1} parent=99 // pred_check
          %p1048 = pneg %p182
        $region102: #{tpu_custom_call.1} parent=99 // pred_check_branch
          %1050 = sbr.rel (%p1048) target = $region104
        $region103: #{tpu_custom_call.1} parent=99 // pred_region
          %s1051 = sand.u32 %s167, 1
          %s1052 = sand.u32 %s167, 1
          %s1053 = smul.addr %s1052, 128
          %s1054 = scalar_lea.vmem [#allocation2], %s1053
        $region104: #{tpu_custom_call.1} parent=99 // pred_fallthru
          _
      $region100: #{tpu_custom_call.1} parent=5 // pred_fallthru
        _
    $region6: #{tpu_custom_call.1} parent=1 // loop_footer
      %s16 = sadd.s32 1, %s12
    $region7: #{tpu_custom_call.1} parent=1 // loop_footer_branch
      %11 = sbr.rel target = $region3
    $region8: #{tpu_custom_call.1} parent=1 // loop_exit
      _

</llo_original>
